<compile_context>
chip_gen: v7x
topology: tpu7x:2x2x1
jax: 0.10.0
libtpu: 0.0.40
codegen_flags: <defaults>
</compile_context>

<pallas_src>
import jax
import jax.numpy as jnp
from jax import lax
from jax.experimental import pallas as pl
from jax.experimental.pallas import tpu as pltpu

IN_FEATURES = 784
HIDDEN = 20          # fc1 out_features (fc2 exists in __init__ but is unused in forward)
HIDDEN_PAD = 128     # lane-dense padded width for the MXU (zero weight columns)


def fcnet_kernel(x_ref, w_ref, b_ref, o_ref):
    # x_ref: (TB, 784) f32, w_ref: (784, 128) bf16, b_ref: (1, 128) f32, o_ref: (TB, 20) f32
    # In-kernel bf16 cast of x (VPU has huge slack; avoids a separate HBM cast pass).
    x = x_ref[...].astype(jnp.bfloat16)
    # fc1: x @ W + b  (MXU matmul, bf16 inputs, f32 accumulation)
    h = jnp.dot(x, w_ref[...], preferred_element_type=jnp.float32) + b_ref[...]
    # ReLU (Dropout(p=0.5) is identity in eval mode; second torch ReLU is a no-op after ReLU)
    # TODO(synk): training-mode dropout (in-kernel pltpu.prng_* mask + 1/(1-p) scale) not implemented.
    h = jnp.maximum(h, 0.0)
    # Mask the padded columns to -inf so the log_softmax over the 20 valid columns is exact.
    col = lax.broadcasted_iota(jnp.int32, h.shape, 1)
    h = jnp.where(col < HIDDEN, h, -jnp.inf)
    # log_softmax along the feature axis (max-shifted, f32)
    m = jnp.max(h, axis=-1, keepdims=True)
    e = jnp.exp(h - m)
    lse = m + jnp.log(jnp.sum(e, axis=-1, keepdims=True))
    # Only the 20 real columns are written to HBM.
    o_ref[...] = h[:, :HIDDEN] - lse


def prepare_params(w1, b1):
    """One-time param prep: pad fc1 weights/bias to 128 output lanes (zero columns)."""
    w_p = jnp.zeros((IN_FEATURES, HIDDEN_PAD), jnp.bfloat16)
    w_p = w_p.at[:, :HIDDEN].set(w1.astype(jnp.bfloat16))
    b_p = jnp.zeros((1, HIDDEN_PAD), jnp.float32)
    b_p = b_p.at[:, :HIDDEN].set(b1.reshape(1, HIDDEN).astype(jnp.float32))
    return w_p, b_p


def _round_up(v, m):
    return ((v + m - 1) // m) * m


def fcnet_forward(x_nchw, w_p, b_p, *, tb=2048):
    """x_nchw: (B, 1, 28, 28) f32; w_p/b_p from prepare_params(). Returns (B, 20) f32 log-probs."""
    B = x_nchw.shape[0]
    # torch.flatten(x, start_dim=1): free reshape, NO dtype cast (cast happens in-kernel).
    x2d = x_nchw.reshape(B, -1)
    if x2d.dtype != jnp.float32:
        x2d = x2d.astype(jnp.float32)

    # Batch tile selection:
    #  * guarantee >= 2 grid steps when B > 8 so v7x can split the batch over both TCs,
    #  * keep TB a multiple of 8 (sublane tiling), capped by tb (VMEM budget: f32 x tile
    #    at tb=2048 is ~6.3 MB per buffer -> ~13 MB double-buffered, within the 32 MiB
    #    limit we request below on every generation including v7x's 64 MiB physical VMEM).
    if B <= 8:
        TB = B                                   # single tiny tile (full-extent block)
    else:
        TB = min(tb, _round_up(pl.cdiv(B, 2), 8))
    grid = (pl.cdiv(B, TB),)

    cost = pl.CostEstimate(
        flops=2 * B * IN_FEATURES * HIDDEN_PAD,
        transcendentals=B * (HIDDEN_PAD + 1),
        bytes_accessed=B * (IN_FEATURES * 4 + HIDDEN * 4)
        + IN_FEATURES * HIDDEN_PAD * 2
        + HIDDEN_PAD * 4,
    )

    return pl.pallas_call(
        fcnet_kernel,
        out_shape=jax.ShapeDtypeStruct((B, HIDDEN), jnp.float32),
        grid_spec=pl.GridSpec(
            grid=grid,
            in_specs=[
                pl.BlockSpec((TB, IN_FEATURES), lambda i: (i, 0)),          # x: tiled over batch
                pl.BlockSpec((IN_FEATURES, HIDDEN_PAD), lambda i: (0, 0)),  # W: VMEM-resident
                pl.BlockSpec((1, HIDDEN_PAD), lambda i: (0, 0)),            # b: VMEM-resident
            ],
            out_specs=pl.BlockSpec((TB, HIDDEN), lambda i: (i, 0)),         # only 20 real cols
        ),
        compiler_params=pltpu.CompilerParams(
            dimension_semantics=("parallel",),        # batch tiles are independent
            vmem_limit_bytes=32 * 1024 * 1024,        # above v5e's 16 MiB scoped default,
        ),                                            # within v7x's 64 MiB physical VMEM
        cost_estimate=cost,
    )(x2d, w_p, b_p)


def init_params(key):
    # Deterministic init mimicking PyTorch nn.Linear default:
    # U(-1/sqrt(in_features), +1/sqrt(in_features)); stored as (in, out) so kernel does x @ W.
    k_w, k_b = jax.random.split(key)
    bound = 1.0 / (IN_FEATURES ** 0.5)
    w1 = jax.random.uniform(k_w, (IN_FEATURES, HIDDEN), jnp.float32, -bound, bound)
    b1 = jax.random.uniform(k_b, (HIDDEN,), jnp.float32, -bound, bound)
    return w1, b1


if __name__ == "__main__":
    key = jax.random.PRNGKey(0)
    k_x, k_p = jax.random.split(key)

    B = 16
    x = jax.random.normal(k_x, (B, 1, 28, 28), jnp.float32)  # NCHW, flattens to 784
    w1, b1 = init_params(k_p)

    # One-time param prep (hoisted out of the forward path).
    w_p, b_p = prepare_params(w1, b1)

    # B=16 > 8 -> TB=8, grid=(2,): exercises the batch-tiled grid with >=2 parallel steps.
    out = fcnet_forward(x, w_p, b_p)
    out = jax.block_until_ready(out)

    # Reference in plain JAX with identical bf16-cast / f32-accumulate numerics.
    x2d_bf = x.reshape(B, -1).astype(jnp.bfloat16)
    h = jnp.dot(x2d_bf, w1.astype(jnp.bfloat16), preferred_element_type=jnp.float32) + b1
    h = jnp.maximum(h, 0.0)
    ref = h - jax.scipy.special.logsumexp(h, axis=1, keepdims=True)

    assert out.shape == (B, HIDDEN)
    assert bool(jnp.all(jnp.isfinite(out)))
    assert jnp.allclose(out, ref, atol=1e-4, rtol=1e-4)

    print("KERNEL_OK")
</pallas_src>

<mosaic_0001>
module attributes {stable_mosaic.version = 11 : i64} {
  func.func @fcnet_kernel(%arg0: i32, %arg1: memref<8x784xf32, #tpu.memory_space<vmem>>, %arg2: memref<784x128xbf16, #tpu.memory_space<vmem>>, %arg3: memref<1x128xf32, #tpu.memory_space<vmem>>, %arg4: memref<8x20xf32, #tpu.memory_space<vmem>>) attributes {dimension_semantics = [#tpu.dimension_semantics<parallel>], iteration_bounds = array<i64: 2>, scalar_prefetch = 0 : i64, scratch_operands = 0 : i64, tpu.core_type = #tpu.core_type<tc>, window_params = [{transform_indices = @transform_0, window_bounds = array<i64: 8, 784>}, {pipeline_mode = #tpu.pipeline_mode<synchronous>, transform_indices = @transform_1, window_bounds = array<i64: 784, 128>}, {pipeline_mode = #tpu.pipeline_mode<synchronous>, transform_indices = @transform_2, window_bounds = array<i64: 1, 128>}, {transform_indices = @transform_3, window_bounds = array<i64: 8, 20>}]} {
    %c0 = arith.constant 0 : index
    %c0_0 = arith.constant 0 : index
    %0 = vector.load %arg1[%c0, %c0_0] : memref<8x784xf32, #tpu.memory_space<vmem>>, vector<8x784xf32>
    %1 = arith.truncf %0 : vector<8x784xf32> to vector<8x784xbf16>
    %c0_1 = arith.constant 0 : index
    %c0_2 = arith.constant 0 : index
    %2 = vector.load %arg2[%c0_1, %c0_2] : memref<784x128xbf16, #tpu.memory_space<vmem>>, vector<784x128xbf16>
    %cst = arith.constant dense<0.000000e+00> : vector<8x128xf32>
    %3 = tpu.matmul %1, %2, %cst {dimension_numbers = #tpu.dot_dimension_numbers<[1], [0], [0], [1], [0, 0, 1, 1], [], []>} : vector<8x784xbf16>, vector<784x128xbf16>, vector<8x128xf32> -> vector<8x128xf32>
    %c0_3 = arith.constant 0 : index
    %c0_4 = arith.constant 0 : index
    %4 = vector.load %arg3[%c0_3, %c0_4] : memref<1x128xf32, #tpu.memory_space<vmem>>, vector<1x128xf32>
    %5 = vector.broadcast %4 : vector<1x128xf32> to vector<8x128xf32>
    %6 = arith.addf %3, %5 : vector<8x128xf32>
    %cst_5 = arith.constant 0.000000e+00 : f32
    %7 = vector.broadcast %cst_5 : f32 to vector<8x128xf32>
    %8 = arith.maximumf %6, %7 : vector<8x128xf32>
    %9 = tpu.iota {dimensions = array<i32: 1>} : vector<8x128xi32>
    %c20_i32 = arith.constant 20 : i32
    %10 = vector.broadcast %c20_i32 : i32 to vector<8x128xi32>
    %11 = arith.cmpi slt, %9, %10 : vector<8x128xi32>
    %cst_6 = arith.constant 0xFF800000 : f32
    %12 = vector.broadcast %cst_6 : f32 to vector<8x128xf32>
    %13 = arith.select %11, %8, %12 : vector<8x128xi1>, vector<8x128xf32>
    %cst_7 = arith.constant dense<0xFF800000> : vector<8xf32>
    %14 = vector.multi_reduction <maximumf>, %13, %cst_7 [1] : vector<8x128xf32> to vector<8xf32>
    %15 = vector.shape_cast %14 : vector<8xf32> to vector<8x1xf32>
    %16 = vector.broadcast %15 : vector<8x1xf32> to vector<8x128xf32>
    %17 = arith.subf %13, %16 : vector<8x128xf32>
    %18 = math.exp %17 : vector<8x128xf32>
    %cst_8 = arith.constant dense<0.000000e+00> : vector<8xf32>
    %19 = vector.multi_reduction <add>, %18, %cst_8 [1] : vector<8x128xf32> to vector<8xf32>
    %20 = vector.shape_cast %19 : vector<8xf32> to vector<8x1xf32>
    %21 = math.log %20 : vector<8x1xf32>
    %22 = arith.addf %15, %21 : vector<8x1xf32>
    %23 = vector.extract_strided_slice %13 {offsets = [0, 0], sizes = [8, 20], strides = [1, 1]} : vector<8x128xf32> to vector<8x20xf32>
    %24 = vector.broadcast %22 : vector<8x1xf32> to vector<8x20xf32>
    %25 = arith.subf %23, %24 : vector<8x20xf32>
    %c0_9 = arith.constant 0 : index
    %c0_10 = arith.constant 0 : index
    %26 = vector.load %arg4[%c0_9, %c0_10] : memref<8x20xf32, #tpu.memory_space<vmem>>, vector<8x20xf32>
    tpu.vector_store %arg4[%c0_9, %c0_10], %25 {strides = array<i32>} : memref<8x20xf32, #tpu.memory_space<vmem>>, vector<8x20xf32>,
    return
  }
  func.func @transform_0(%arg0: i32) -> (i32, i32) {
    %c0_i32 = arith.constant 0 : i32
    %c0_i32_0 = arith.constant 0 : i32
    return %arg0, %c0_i32 : i32, i32
  }
  func.func @transform_1(%arg0: i32) -> (i32, i32) {
    %c0_i32 = arith.constant 0 : i32
    %c0_i32_0 = arith.constant 0 : i32
    %c0_i32_1 = arith.constant 0 : i32
    return %c0_i32, %c0_i32_0 : i32, i32
  }
  func.func @transform_2(%arg0: i32) -> (i32, i32) {
    %c0_i32 = arith.constant 0 : i32
    %c0_i32_0 = arith.constant 0 : i32
    %c0_i32_1 = arith.constant 0 : i32
    return %c0_i32, %c0_i32_0 : i32, i32
  }
  func.func @transform_3(%arg0: i32) -> (i32, i32) {
    %c0_i32 = arith.constant 0 : i32
    %c0_i32_0 = arith.constant 0 : i32
    return %arg0, %c0_i32 : i32, i32
  }
}

</mosaic_0001>

<llo_original>
// kernel: tpu_custom_call.1
$region0: #{tpu_custom_call.1}
  #allocation0 [shape = 'u32[]', space=smem, size = 0x4, offset = 0x4, fixed_abs, tag = 'smem constant byte address 0x4 - core index']
  #allocation1 [shape = 'u32[144,128]{1,0:T(1,128)}', space=vmem, size = 0x12000, scoped, tag = 'internal scratch']
  %s0 = inlined_call_operand.hbm [shape: f32[16,784], index: 0, kind: input, shape index: {}]
  %s1 = inlined_call_operand.hbm [shape: bf16[784,128], index: 1, kind: input, shape index: {}]
  %s2 = inlined_call_operand.vmem [shape: f32[1,128], index: 2, kind: input, shape index: {}]
  %s3 = inlined_call_operand.hbm [shape: f32[16,20], index: 3, kind: output, shape index: {}]
  %s4 = sld [smem:[#allocation0]]
  $region53: #{tpu_custom_call.1} parent=0
    _
  %s6 = ssub.s32 1, %s4
  %s7 = scalar_select 0, %s6, %s4
  $region1: #{tpu_custom_call.1} parent=0
    #allocation2 [shape = 'u8[57344]{0}', space=vmem, size = 0xe000, scoped, tag = 'input window, operand 0']
    #allocation3 [shape = 's32[2]{0}', space=sflag, size = 0x8, scoped, tag = 'scoped memory for tpu_custom_call.1']
    #allocation4 [shape = 's32[2]{0}', space=sflag, size = 0x8, scoped, tag = 'scoped memory for tpu_custom_call.1']
    #allocation5 [shape = 'u8[200704]{0}', space=vmem, size = 0x31000, scoped, tag = 'input window, operand 1, single buffered']
    #allocation6 [shape = 's32[1]{0}', space=sflag, size = 0x4, scoped, tag = 'scoped memory for tpu_custom_call.1']
    #allocation7 [shape = 'u8[8192]{0}', space=vmem, size = 0x2000, scoped, tag = 'output window, operand 0']
    %8 = vsyncpa [#allocation3], 0
    %s9 = scalar_lea.sflag [#allocation3], 1
    %10 = vsyncpa %s9, 0
    %11 = vsyncpa [#allocation6], 0
    %12 = vsyncpa [#allocation4], 0
    %s13 = scalar_lea.sflag [#allocation4], 1
    %14 = vsyncpa %s13, 0
    loop: start=0, step=1, limit=4
    $region2: #{tpu_custom_call.1} parent=1 // loop_pre_header
      _
    $region3: #{tpu_custom_call.1} parent=1 // loop_header
      %s16 = sphi 0, %s20
      %p17 = scmp.ge.s32.totalorder %s16, 4
      %s26 = sphi 0, %s28
      %s29 = sphi 0, %s26
      %s30 = sphi 0, %s29
      %s46 = sphi 0, %s30
      %s50 = sphi 0, %s50
      %s52 = sphi 0, %s50
      %s53 = sphi 0, %s52
      %s67 = sphi 0, %s53
      %s71 = sphi 0, %s71
      %s73 = sphi 0, %s71
      %s74 = sphi 0, %s73
      %s88 = sphi 0, %s74
      %s94 = sphi 0, %s96
      %s97 = sphi 0, %s94
      %s98 = sphi 0, %s97
      %s114 = sphi 0, %s98
    $region4: #{tpu_custom_call.1} parent=1 // loop_header_branch
      %19 = sbr.rel (%p17) target = $region8
    $region5: #{tpu_custom_call.1} parent=1 // loop_body
      %s21 = ssub.s32 %s16, 1
      %s22 = ssub.s32 %s16, 2
      %s23 = sadd.s32 %s16, 1
      %s24 = ssub.s32 %s16, %s23
      %p25 = scmp.eq.s32.totalorder %s24, 0
      %s27 = sadd.s32 %s26, 1
      %s28 = scalar_select %p25, %s26, %s27
      %p31 = pneg %p25
      %p32 = scmp.eq.s32.totalorder %s16, 1
      %p33 = por %p31, %p32
      %p34 = scmp.ne.s32.totalorder %s26, %s29
      %p35 = scmp.eq.s32.totalorder %s16, 0
      %p36 = por %p34, %p35
      %p37 = scmp.ne.s32.totalorder %s26, %s29
      %p38 = scmp.eq.s32.totalorder %s21, 1
      %p39 = por %p37, %p38
      %p40 = scmp.ne.s32.totalorder %s29, %s30
      %p41 = scmp.eq.s32.totalorder %s21, 0
      %p42 = por %p40, %p41
      %p43 = scmp.ne.s32.totalorder %s29, %s30
      %p44 = scmp.eq.s32.totalorder %s22, 1
      %p45 = por %p43, %p44
      %p47 = scmp.ne.s32.totalorder %s30, %s46
      %p48 = scmp.eq.s32.totalorder %s22, 0
      %p49 = por %p47, %p48
      %s51 = sadd.s32 %s50, 1
      %p54 = scmp.eq.s32.totalorder %s16, 1
      %p55 = scmp.ne.s32.totalorder %s50, %s52
      %p56 = scmp.eq.s32.totalorder %s16, 0
      %p57 = por %p55, %p56
      %p58 = scmp.ne.s32.totalorder %s50, %s52
      %p59 = scmp.eq.s32.totalorder %s21, 1
      %p60 = por %p58, %p59
      %p61 = scmp.ne.s32.totalorder %s52, %s53
      %p62 = scmp.eq.s32.totalorder %s21, 0
      %p63 = por %p61, %p62
      %p64 = scmp.ne.s32.totalorder %s52, %s53
      %p65 = scmp.eq.s32.totalorder %s22, 1
      %p66 = por %p64, %p65
      %p68 = scmp.ne.s32.totalorder %s53, %s67
      %p69 = scmp.eq.s32.totalorder %s22, 0
      %p70 = por %p68, %p69
      %s72 = sadd.s32 %s71, 1
      %p75 = scmp.eq.s32.totalorder %s16, 1
      %p76 = scmp.ne.s32.totalorder %s71, %s73
      %p77 = scmp.eq.s32.totalorder %s16, 0
      %p78 = por %p76, %p77
      %p79 = scmp.ne.s32.totalorder %s71, %s73
      %p80 = scmp.eq.s32.totalorder %s21, 1
      %p81 = por %p79, %p80
      %p82 = scmp.ne.s32.totalorder %s73, %s74
      %p83 = scmp.eq.s32.totalorder %s21, 0
      %p84 = por %p82, %p83
      %p85 = scmp.ne.s32.totalorder %s73, %s74
      %p86 = scmp.eq.s32.totalorder %s22, 1
      %p87 = por %p85, %p86
      %p89 = scmp.ne.s32.totalorder %s74, %s88
      %p90 = scmp.eq.s32.totalorder %s22, 0
      %p91 = por %p89, %p90
      %s92 = ssub.s32 %s16, %s23
      %p93 = scmp.eq.s32.totalorder %s92, 0
      %s95 = sadd.s32 %s94, 1
      %s96 = scalar_select %p93, %s94, %s95
      %p99 = pneg %p93
      %p100 = scmp.eq.s32.totalorder %s16, 1
      %p101 = por %p99, %p100
      %p102 = scmp.ne.s32.totalorder %s94, %s97
      %p103 = scmp.eq.s32.totalorder %s16, 0
      %p104 = por %p102, %p103
      %p105 = scmp.ne.s32.totalorder %s94, %s97
      %p106 = scmp.eq.s32.totalorder %s21, 1
      %p107 = por %p105, %p106
      %p108 = scmp.ne.s32.totalorder %s97, %s98
      %p109 = scmp.eq.s32.totalorder %s21, 0
      %p110 = por %p108, %p109
      %p111 = scmp.ne.s32.totalorder %s97, %s98
      %p112 = scmp.eq.s32.totalorder %s22, 1
      %p113 = por %p111, %p112
      %p115 = scmp.ne.s32.totalorder %s98, %s114
      %p116 = scmp.eq.s32.totalorder %s22, 0
      %p117 = por %p115, %p116
      %p118 = scmp.le.s32.totalorder 1, %s16
      %p119 = scmp.lt.s32.totalorder %s16, 3
      %p120 = pnand %p118, %p119
      %p121 = pneg %p120
      // Predicated region
      $region9: #{tpu_custom_call.1} parent=5 // pred_check
        _
      $region10: #{tpu_custom_call.1} parent=5 // pred_check_branch
        %123 = sbr.rel (%p120) target = $region12
      $region11: #{tpu_custom_call.1} parent=5 // pred_region
        %s124 = ssub.s32 %s16, 1
        // Predicated region
        $region13: #{tpu_custom_call.1} parent=11 // pred_check
          %p125 = pneg %p63
        $region14: #{tpu_custom_call.1} parent=11 // pred_check_branch
          %127 = sbr.rel (%p125) target = $region16
        $region15: #{tpu_custom_call.1} parent=11 // pred_region
          %s129 = ssub.s32 6272, 6272
          %130 = vsyncadd [#allocation6], %s129
          %s131 = sshll.u32 [#allocation5], 4
          %s132 = int_to_ptr.vmem [resolvable:$true] %s131
          %137 = dma.hbm_to_vmem [thread:$0]  %s1, 6272, %s132, [#allocation6], 64, 64, 4
        $region16: #{tpu_custom_call.1} parent=11 // pred_fallthru
          _
        // Predicated region
        $region17: #{tpu_custom_call.1} parent=11 // pred_check
          %p138 = pneg %p84
        $region18: #{tpu_custom_call.1} parent=11 // pred_check_branch
          %140 = sbr.rel (%p138) target = $region20
        $region19: #{tpu_custom_call.1} parent=11 // pred_region
          _
        $region20: #{tpu_custom_call.1} parent=11 // pred_fallthru
          _
      $region12: #{tpu_custom_call.1} parent=5 // pred_fallthru
        _
      %p141 = scmp.lt.s32.totalorder %s16, 2
      // Predicated region
      $region21: #{tpu_custom_call.1} parent=5 // pred_check
        %p142 = pneg %p141
      $region22: #{tpu_custom_call.1} parent=5 // pred_check_branch
        %144 = sbr.rel (%p142) target = $region24
      $region23: #{tpu_custom_call.1} parent=5 // pred_region
        // Predicated region
        $region25: #{tpu_custom_call.1} parent=23 // pred_check
          %p145 = pneg %p36
        $region26: #{tpu_custom_call.1} parent=23 // pred_check_branch
          %147 = sbr.rel (%p145) target = $region28
        $region27: #{tpu_custom_call.1} parent=23 // pred_region
          %s148 = sand.u32 %s26, 1
          %s149 = scalar_lea.sflag [#allocation3], %s148
          %s150 = sand.u32 %s26, 1
          %s151 = smul.addr %s150, 56
          %s152 = scalar_lea.vmem [#allocation2], %s151
          %s154 = ssub.s32 896, 896
          %155 = vsyncadd %s149, %s154
          %s156 = smul.addr %s16, 7
          %s157 = smul.addr %s156, 128
          %s158 = scalar_lea.hbm %s0, %s157
          %s160 = sshll.u32 %s152, 4
          %s161 = int_to_ptr.vmem [resolvable:$true] %s160
          %163 = dma.hbm_to_vmem [thread:$0]  %s158, 896, %s161, %s149
        $region28: #{tpu_custom_call.1} parent=23 // pred_fallthru
          _
      $region24: #{tpu_custom_call.1} parent=5 // pred_fallthru
        _
      %p164 = scmp.le.s32.totalorder 1, %s16
      %p165 = scmp.lt.s32.totalorder %s16, 3
      %p166 = pnand %p164, %p165
      %p167 = pneg %p166
      // Predicated region
      $region29: #{tpu_custom_call.1} parent=5 // pred_check
        _
      $region30: #{tpu_custom_call.1} parent=5 // pred_check_branch
        %169 = sbr.rel (%p166) target = $region32
      $region31: #{tpu_custom_call.1} parent=5 // pred_region
        %s170 = ssub.s32 %s16, 1
        %s171 = sand.u32 %s29, 1
        %s172 = scalar_lea.sflag [#allocation3], %s171
        %s173 = sand.u32 %s29, 1
        %s174 = smul.addr %s173, 56
        %s175 = scalar_lea.vmem [#allocation2], %s174
        // Predicated region
        $region33: #{tpu_custom_call.1} parent=31 // pred_check
          %p176 = pneg %p42
        $region34: #{tpu_custom_call.1} parent=31 // pred_check_branch
          %178 = sbr.rel (%p176) target = $region36
        $region35: #{tpu_custom_call.1} parent=31 // pred_region
          %179 = dma.done %s172, 896
        $region36: #{tpu_custom_call.1} parent=31 // pred_fallthru
          _
        // Predicated region
        $region37: #{tpu_custom_call.1} parent=31 // pred_check
          %p180 = pneg %p63
        $region38: #{tpu_custom_call.1} parent=31 // pred_check_branch
          %182 = sbr.rel (%p180) target = $region40
        $region39: #{tpu_custom_call.1} parent=31 // pred_region
          %183 = dma.done [#allocation6], 6272
        $region40: #{tpu_custom_call.1} parent=31 // pred_fallthru
          _
        %s184 = sand.u32 %s29, 1
        %s185 = scalar_lea.sflag [#allocation3], %s184
        %s186 = sand.u32 %s29, 1
        %s187 = smul.addr %s186, 56
        %s188 = scalar_lea.vmem [#allocation2], %s187
        %p189 = pneg %p42
        %p190 = pneg %p39
        %p191 = pneg %p63
        %p192 = pneg %p60
        %p193 = pneg %p84
        %p194 = pneg %p81
        %p195 = pneg %p110
        %p196 = pneg %p107
        %s197 = sand.u32 %s97, 1
        %s198 = scalar_lea.sflag [#allocation4], %s197
        %s199 = sand.u32 %s97, 1
        %s200 = smul.addr %s199, 8
        %s201 = scalar_lea.vmem [#allocation7], %s200
        %v203 = vld [vmem:[%s175] sm:$0xff]
        %v204 = vld [vmem:[%s175 + $0x8] sm:$0xff]
        %v205 = vld [vmem:[%s175 + $0x10] sm:$0xff]
        %v206 = vld [vmem:[%s175 + $0x18] sm:$0xff]
        %v207 = vld [vmem:[%s175 + $0x20] sm:$0xff]
        %v208 = vld [vmem:[%s175 + $0x28] sm:$0xff]
        %v209 = vld [vmem:[%s175 + $0x30] sm:$0xff]
        %v210 = vpack.c.bf16 %v203, %v203
        %v211 = vpack.c.bf16 %v204, %v204
        %v212 = vpack.c.bf16 %v205, %v205
        %v213 = vpack.c.bf16 %v206, %v206
        %v214 = vpack.c.bf16 %v207, %v207
        %v215 = vpack.c.bf16 %v208, %v208
        %v216 = vpack.c.bf16 %v209, %v209
        %v217 = vld [vmem:[#allocation5] sm:$0xf]
        %v218 = vld [vmem:[#allocation5 + $0x4] sm:$0xf]
        %v219 = vld [vmem:[#allocation5 + $0x8] sm:$0xf]
        %v220 = vld [vmem:[#allocation5 + $0xc] sm:$0xf]
        %v221 = vld [vmem:[#allocation5 + $0x10] sm:$0xf]
        %v222 = vld [vmem:[#allocation5 + $0x14] sm:$0xf]
        %v223 = vld [vmem:[#allocation5 + $0x18] sm:$0xf]
        %v224 = vld [vmem:[#allocation5 + $0x1c] sm:$0xf]
        %v225 = vld [vmem:[#allocation5 + $0x20] sm:$0xf]
        %v226 = vld [vmem:[#allocation5 + $0x24] sm:$0xf]
        %v227 = vld [vmem:[#allocation5 + $0x28] sm:$0xf]
        %v228 = vld [vmem:[#allocation5 + $0x2c] sm:$0xf]
        %v229 = vld [vmem:[#allocation5 + $0x30] sm:$0xf]
        %v230 = vld [vmem:[#allocation5 + $0x34] sm:$0xf]
        %v231 = vld [vmem:[#allocation5 + $0x38] sm:$0xf]
        %v232 = vld [vmem:[#allocation5 + $0x3c] sm:$0xf]
        %v233 = vld [vmem:[#allocation5 + $0x40] sm:$0xf]
        %v234 = vld [vmem:[#allocation5 + $0x44] sm:$0xf]
        %v235 = vld [vmem:[#allocation5 + $0x48] sm:$0xf]
        %v236 = vld [vmem:[#allocation5 + $0x4c] sm:$0xf]
        %v237 = vld [vmem:[#allocation5 + $0x50] sm:$0xf]
        %v238 = vld [vmem:[#allocation5 + $0x54] sm:$0xf]
        %v239 = vld [vmem:[#allocation5 + $0x58] sm:$0xf]
        %v240 = vld [vmem:[#allocation5 + $0x5c] sm:$0xf]
        %v241 = vld [vmem:[#allocation5 + $0x60] sm:$0xf]
        %v242 = vld [vmem:[#allocation5 + $0x64] sm:$0xf]
        %v243 = vld [vmem:[#allocation5 + $0x68] sm:$0xf]
        %v244 = vld [vmem:[#allocation5 + $0x6c] sm:$0xf]
        %v245 = vld [vmem:[#allocation5 + $0x70] sm:$0xf]
        %v246 = vld [vmem:[#allocation5 + $0x74] sm:$0xf]
        %v247 = vld [vmem:[#allocation5 + $0x78] sm:$0xf]
        %v248 = vld [vmem:[#allocation5 + $0x7c] sm:$0xf]
        %v249 = vld [vmem:[#allocation5 + $0x80] sm:$0xf]
        %v250 = vld [vmem:[#allocation5 + $0x84] sm:$0xf]
        %v251 = vld [vmem:[#allocation5 + $0x88] sm:$0xf]
        %v252 = vld [vmem:[#allocation5 + $0x8c] sm:$0xf]
        %v253 = vld [vmem:[#allocation5 + $0x90] sm:$0xf]
        %v254 = vld [vmem:[#allocation5 + $0x94] sm:$0xf]
        %v255 = vld [vmem:[#allocation5 + $0x98] sm:$0xf]
        %v256 = vld [vmem:[#allocation5 + $0x9c] sm:$0xf]
        %v257 = vld [vmem:[#allocation5 + $0xa0] sm:$0xf]
        %v258 = vld [vmem:[#allocation5 + $0xa4] sm:$0xf]
        %v259 = vld [vmem:[#allocation5 + $0xa8] sm:$0xf]
        %v260 = vld [vmem:[#allocation5 + $0xac] sm:$0xf]
        %v261 = vld [vmem:[#allocation5 + $0xb0] sm:$0xf]
        %v262 = vld [vmem:[#allocation5 + $0xb4] sm:$0xf]
        %v263 = vld [vmem:[#allocation5 + $0xb8] sm:$0xf]
        %v264 = vld [vmem:[#allocation5 + $0xbc] sm:$0xf]
        %v265 = vld [vmem:[#allocation5 + $0xc0] sm:$0xf]
        %v266 = vld [vmem:[#allocation5 + $0xc4] sm:$0xf]
        %v267 = vld [vmem:[#allocation5 + $0xc8] sm:$0xf]
        %v268 = vld [vmem:[#allocation5 + $0xcc] sm:$0xf]
        %v269 = vld [vmem:[#allocation5 + $0xd0] sm:$0xf]
        %v270 = vld [vmem:[#allocation5 + $0xd4] sm:$0xf]
        %v271 = vld [vmem:[#allocation5 + $0xd8] sm:$0xf]
        %v272 = vld [vmem:[#allocation5 + $0xdc] sm:$0xf]
        %v273 = vld [vmem:[#allocation5 + $0xe0] sm:$0xf]
        %v274 = vld [vmem:[#allocation5 + $0xe4] sm:$0xf]
        %v275 = vld [vmem:[#allocation5 + $0xe8] sm:$0xf]
        %v276 = vld [vmem:[#allocation5 + $0xec] sm:$0xf]
        %v277 = vld [vmem:[#allocation5 + $0xf0] sm:$0xf]
        %v278 = vld [vmem:[#allocation5 + $0xf4] sm:$0xf]
        %v279 = vld [vmem:[#allocation5 + $0xf8] sm:$0xf]
        %v280 = vld [vmem:[#allocation5 + $0xfc] sm:$0xf]
        %v281 = vld [vmem:[#allocation5 + $0x100] sm:$0xf]
        %v282 = vld [vmem:[#allocation5 + $0x104] sm:$0xf]
        %v283 = vld [vmem:[#allocation5 + $0x108] sm:$0xf]
        %v284 = vld [vmem:[#allocation5 + $0x10c] sm:$0xf]
        %v285 = vld [vmem:[#allocation5 + $0x110] sm:$0xf]
        %v286 = vld [vmem:[#allocation5 + $0x114] sm:$0xf]
        %v287 = vld [vmem:[#allocation5 + $0x118] sm:$0xf]
        %v288 = vld [vmem:[#allocation5 + $0x11c] sm:$0xf]
        %v289 = vld [vmem:[#allocation5 + $0x120] sm:$0xf]
        %v290 = vld [vmem:[#allocation5 + $0x124] sm:$0xf]
        %v291 = vld [vmem:[#allocation5 + $0x128] sm:$0xf]
        %v292 = vld [vmem:[#allocation5 + $0x12c] sm:$0xf]
        %v293 = vld [vmem:[#allocation5 + $0x130] sm:$0xf]
        %v294 = vld [vmem:[#allocation5 + $0x134] sm:$0xf]
        %v295 = vld [vmem:[#allocation5 + $0x138] sm:$0xf]
        %v296 = vld [vmem:[#allocation5 + $0x13c] sm:$0xf]
        %v297 = vld [vmem:[#allocation5 + $0x140] sm:$0xf]
        %v298 = vld [vmem:[#allocation5 + $0x144] sm:$0xf]
        %v299 = vld [vmem:[#allocation5 + $0x148] sm:$0xf]
        %v300 = vld [vmem:[#allocation5 + $0x14c] sm:$0xf]
        %v301 = vld [vmem:[#allocation5 + $0x150] sm:$0xf]
        %v302 = vld [vmem:[#allocation5 + $0x154] sm:$0xf]
        %v303 = vld [vmem:[#allocation5 + $0x158] sm:$0xf]
        %v304 = vld [vmem:[#allocation5 + $0x15c] sm:$0xf]
        %v305 = vld [vmem:[#allocation5 + $0x160] sm:$0xf]
        %v306 = vld [vmem:[#allocation5 + $0x164] sm:$0xf]
        %v307 = vld [vmem:[#allocation5 + $0x168] sm:$0xf]
        %v308 = vld [vmem:[#allocation5 + $0x16c] sm:$0xf]
        %v309 = vld [vmem:[#allocation5 + $0x170] sm:$0xf]
        %v310 = vld [vmem:[#allocation5 + $0x174] sm:$0xf]
        %v311 = vld [vmem:[#allocation5 + $0x178] sm:$0xf]
        %v312 = vld [vmem:[#allocation5 + $0x17c] sm:$0xf]
        %v313 = vld [vmem:[#allocation5 + $0x180] sm:$0xf]
        %v314 = vld [vmem:[#allocation5 + $0x184] sm:$0xf]
        %v315 = vld [vmem:[%s2] sm:$0x1]
        %v317 = vlaneseq
        %v318 = vshrl.u32 %v317, 7
        %v319 = vsub.s32 0, %v318
        %v320 = vrot.slane %v315, %v319
        %v420 = vunpack.c.l.b16 %v217
        %v421 = vunpack.c.l.b16 %v218
        %v422 = vunpack.c.l.b16 %v219
        %v423 = vunpack.c.l.b16 %v220
        %v424 = vunpack.c.l.b16 %v221
        %v425 = vunpack.c.l.b16 %v222
        %v426 = vunpack.c.l.b16 %v223
        %v427 = vunpack.c.l.b16 %v224
        %v428 = vunpack.c.l.b16 %v225
        %v429 = vunpack.c.l.b16 %v226
        %v430 = vunpack.c.l.b16 %v227
        %v431 = vunpack.c.l.b16 %v228
        %v432 = vunpack.c.l.b16 %v229
        %v433 = vunpack.c.l.b16 %v230
        %v434 = vunpack.c.l.b16 %v231
        %v435 = vunpack.c.l.b16 %v232
        %v436 = vunpack.c.l.b16 %v233
        %v437 = vunpack.c.l.b16 %v234
        %v438 = vunpack.c.l.b16 %v235
        %v439 = vunpack.c.l.b16 %v236
        %v440 = vunpack.c.l.b16 %v237
        %v441 = vunpack.c.l.b16 %v238
        %v442 = vunpack.c.l.b16 %v239
        %v443 = vunpack.c.l.b16 %v240
        %v444 = vunpack.c.l.b16 %v241
        %v445 = vunpack.c.l.b16 %v242
        %v446 = vunpack.c.l.b16 %v243
        %v447 = vunpack.c.l.b16 %v244
        %v448 = vunpack.c.l.b16 %v245
        %v449 = vunpack.c.l.b16 %v246
        %v450 = vunpack.c.l.b16 %v247
        %v451 = vunpack.c.l.b16 %v248
        %v452 = vunpack.c.l.b16 %v249
        %v453 = vunpack.c.l.b16 %v250
        %v454 = vunpack.c.l.b16 %v251
        %v455 = vunpack.c.l.b16 %v252
        %v456 = vunpack.c.l.b16 %v253
        %v457 = vunpack.c.l.b16 %v254
        %v458 = vunpack.c.l.b16 %v255
        %v459 = vunpack.c.l.b16 %v256
        %v460 = vunpack.c.l.b16 %v257
        %v461 = vunpack.c.l.b16 %v258
        %v462 = vunpack.c.l.b16 %v259
        %v463 = vunpack.c.l.b16 %v260
        %v464 = vunpack.c.l.b16 %v261
        %v465 = vunpack.c.l.b16 %v262
        %v466 = vunpack.c.l.b16 %v263
        %v467 = vunpack.c.l.b16 %v264
        %v468 = vunpack.c.l.b16 %v265
        %v469 = vunpack.c.l.b16 %v266
        %v470 = vunpack.c.l.b16 %v267
        %v471 = vunpack.c.l.b16 %v268
        %v472 = vunpack.c.l.b16 %v269
        %v473 = vunpack.c.l.b16 %v270
        %v474 = vunpack.c.l.b16 %v271
        %v475 = vunpack.c.l.b16 %v272
        %v476 = vunpack.c.l.b16 %v273
        %v477 = vunpack.c.l.b16 %v274
        %v478 = vunpack.c.l.b16 %v275
        %v479 = vunpack.c.l.b16 %v276
        %v480 = vunpack.c.l.b16 %v277
        %v481 = vunpack.c.l.b16 %v278
        %v482 = vunpack.c.l.b16 %v279
        %v483 = vunpack.c.l.b16 %v280
        %v484 = vunpack.c.l.b16 %v281
        %v485 = vunpack.c.l.b16 %v282
        %v486 = vunpack.c.l.b16 %v283
        %v487 = vunpack.c.l.b16 %v284
        %v488 = vunpack.c.l.b16 %v285
        %v489 = vunpack.c.l.b16 %v286
        %v490 = vunpack.c.l.b16 %v287
        %v491 = vunpack.c.l.b16 %v288
        %v492 = vunpack.c.l.b16 %v289
        %v493 = vunpack.c.l.b16 %v290
        %v494 = vunpack.c.l.b16 %v291
        %v495 = vunpack.c.l.b16 %v292
        %v496 = vunpack.c.l.b16 %v293
        %v497 = vunpack.c.l.b16 %v294
        %v498 = vunpack.c.l.b16 %v295
        %v499 = vunpack.c.l.b16 %v296
        %v500 = vunpack.c.l.b16 %v297
        %v501 = vunpack.c.l.b16 %v298
        %v502 = vunpack.c.l.b16 %v299
        %v503 = vunpack.c.l.b16 %v300
        %v504 = vunpack.c.l.b16 %v301
        %v505 = vunpack.c.l.b16 %v302
        %v506 = vunpack.c.l.b16 %v303
        %v507 = vunpack.c.l.b16 %v304
        %v508 = vunpack.c.l.b16 %v305
        %v509 = vunpack.c.l.b16 %v306
        %v510 = vunpack.c.l.b16 %v307
        %v511 = vunpack.c.l.b16 %v308
        %v512 = vunpack.c.l.b16 %v309
        %v513 = vunpack.c.l.b16 %v310
        %v514 = vunpack.c.l.b16 %v311
        %v515 = vunpack.c.l.b16 %v312
        %v516 = vunpack.c.l.b16 %v313
        %v517 = vunpack.c.l.b16 %v314
        %v518 = vpack.c.b16 %v421, %v420
        %v519 = vpack.c.b16 %v423, %v422
        %v520 = vpack.c.b16 %v425, %v424
        %v521 = vpack.c.b16 %v427, %v426
        %v522 = vpack.c.b16 %v429, %v428
        %v523 = vpack.c.b16 %v431, %v430
        %v524 = vpack.c.b16 %v433, %v432
        %v525 = vpack.c.b16 %v435, %v434
        %v526 = vpack.c.b16 %v437, %v436
        %v527 = vpack.c.b16 %v439, %v438
        %v528 = vpack.c.b16 %v441, %v440
        %v529 = vpack.c.b16 %v443, %v442
        %v530 = vpack.c.b16 %v445, %v444
        %v531 = vpack.c.b16 %v447, %v446
        %v532 = vpack.c.b16 %v449, %v448
        %v533 = vpack.c.b16 %v451, %v450
        %v534 = vpack.c.b16 %v453, %v452
        %v535 = vpack.c.b16 %v455, %v454
        %v536 = vpack.c.b16 %v457, %v456
        %v537 = vpack.c.b16 %v459, %v458
        %v538 = vpack.c.b16 %v461, %v460
        %v539 = vpack.c.b16 %v463, %v462
        %v540 = vpack.c.b16 %v465, %v464
        %v541 = vpack.c.b16 %v467, %v466
        %v542 = vpack.c.b16 %v469, %v468
        %v543 = vpack.c.b16 %v471, %v470
        %v544 = vpack.c.b16 %v473, %v472
        %v545 = vpack.c.b16 %v475, %v474
        %v546 = vpack.c.b16 %v477, %v476
        %v547 = vpack.c.b16 %v479, %v478
        %v548 = vpack.c.b16 %v481, %v480
        %v549 = vpack.c.b16 %v483, %v482
        %v550 = vpack.c.b16 %v485, %v484
        %v551 = vpack.c.b16 %v487, %v486
        %v552 = vpack.c.b16 %v489, %v488
        %v553 = vpack.c.b16 %v491, %v490
        %v554 = vpack.c.b16 %v493, %v492
        %v555 = vpack.c.b16 %v495, %v494
        %v556 = vpack.c.b16 %v497, %v496
        %v557 = vpack.c.b16 %v499, %v498
        %v558 = vpack.c.b16 %v501, %v500
        %v559 = vpack.c.b16 %v503, %v502
        %v560 = vpack.c.b16 %v505, %v504
        %v561 = vpack.c.b16 %v507, %v506
        %v562 = vpack.c.b16 %v509, %v508
        %v563 = vpack.c.b16 %v511, %v510
        %v564 = vpack.c.b16 %v513, %v512
        %v565 = vpack.c.b16 %v515, %v514
        %v566 = vpack.c.b16 %v517, %v516
        %vm616 = vcmask 130048
        %v618 = vsel %vm616, %v216, 0
        %620 = vmatprep.subr.bf16.mxu0 0
        %621 = vmatpush1.bf16.msra.mxu0 %v518
        %622 = vmatprep.subr.bf16.mxu0 0
        %623 = vmatpush1.bf16.msra.mxu0 %v519
        %624 = vmatprep.subr.bf16.mxu0 0
        %625 = vmatpush1.bf16.msra.mxu0 %v520
        %626 = vmatprep.subr.bf16.mxu0 0
        %627 = vmatpush1.bf16.msra.mxu0 %v521
        %628 = vmatprep.subr.bf16.mxu0 0
        %629 = vmatpush1.bf16.msra.mxu0 %v522
        %630 = vmatprep.subr.bf16.mxu0 0
        %631 = vmatpush1.bf16.msra.mxu0 %v523
        %632 = vmatprep.subr.bf16.mxu0 0
        %633 = vmatpush1.bf16.msra.mxu0 %v524
        %634 = vmatprep.subr.bf16.mxu0 0
        %635 = vmatpush1.bf16.msra.mxu0 %v525
        %636 = vmatprep.subr.bf16.mxu0 0
        %637 = vmatpush1.bf16.msra.mxu0 %v526
        %638 = vmatprep.subr.bf16.mxu0 0
        %639 = vmatpush1.bf16.msra.mxu0 %v527
        %640 = vmatprep.subr.bf16.mxu0 0
        %641 = vmatpush1.bf16.msra.mxu0 %v528
        %642 = vmatprep.subr.bf16.mxu0 0
        %643 = vmatpush1.bf16.msra.mxu0 %v529
        %644 = vmatprep.subr.bf16.mxu0 0
        %645 = vmatpush1.bf16.msra.mxu0 %v530
        %646 = vmatprep.subr.bf16.mxu0 0
        %647 = vmatpush1.bf16.msra.mxu0 %v531
        %648 = vmatprep.subr.bf16.mxu0 0
        %649 = vmatpush1.bf16.msra.mxu0 %v532
        %650 = vmatprep.subr.bf16.mxu0 0
        %651 = vmatpush1.bf16.msra.mxu0 %v533
        %652 = vmatprep.mubr.bf16.mxu0 %v211
        %653 = vmatmul.mubr.bf16.gmra.mrb[0].mxu0 %v210
        %v654 = vpop.f32.mrb[0].mxu0
        %v655 = vadd.f32 %v320, %v654
        %v656 = vpop.f32.mrb[0].mxu0
        %v657 = vpop.f32.mrb[0].mxu0
        %v658 = vpop.f32.mrb[0].mxu0
        %659 = vdwg.mxu0
        %660 = vmatprep.subr.bf16.mxu0 0
        %661 = vmatpush1.bf16.msra.mxu0 %v534
        %662 = vmatprep.subr.bf16.mxu0 0
        %663 = vmatpush1.bf16.msra.mxu0 %v535
        %664 = vmatprep.subr.bf16.mxu0 0
        %665 = vmatpush1.bf16.msra.mxu0 %v536
        %666 = vmatprep.subr.bf16.mxu0 0
        %667 = vmatpush1.bf16.msra.mxu0 %v537
        %668 = vmatprep.subr.bf16.mxu0 0
        %669 = vmatpush1.bf16.msra.mxu0 %v538
        %670 = vmatprep.subr.bf16.mxu0 0
        %671 = vmatpush1.bf16.msra.mxu0 %v539
        %672 = vmatprep.subr.bf16.mxu0 0
        %673 = vmatpush1.bf16.msra.mxu0 %v540
        %674 = vmatprep.subr.bf16.mxu0 0
        %675 = vmatpush1.bf16.msra.mxu0 %v541
        %676 = vmatprep.subr.bf16.mxu0 0
        %677 = vmatpush1.bf16.msra.mxu0 %v542
        %678 = vmatprep.subr.bf16.mxu0 0
        %679 = vmatpush1.bf16.msra.mxu0 %v543
        %680 = vmatprep.subr.bf16.mxu0 0
        %681 = vmatpush1.bf16.msra.mxu0 %v544
        %682 = vmatprep.subr.bf16.mxu0 0
        %683 = vmatpush1.bf16.msra.mxu0 %v545
        %684 = vmatprep.subr.bf16.mxu0 0
        %685 = vmatpush1.bf16.msra.mxu0 %v546
        %686 = vmatprep.subr.bf16.mxu0 0
        %687 = vmatpush1.bf16.msra.mxu0 %v547
        %688 = vmatprep.subr.bf16.mxu0 0
        %689 = vmatpush1.bf16.msra.mxu0 %v548
        %690 = vmatprep.subr.bf16.mxu0 0
        %691 = vmatpush1.bf16.msra.mxu0 %v549
        %692 = vmatprep.mubr.bf16.mxu0 %v213
        %693 = vmatmul.mubr.bf16.gmra.mrb[0].mxu0 %v212
        %v694 = vpop.f32.mrb[0].mxu0
        %v695 = vadd.f32 %v655, %v694
        %v696 = vpop.f32.mrb[0].mxu0
        %v697 = vpop.f32.mrb[0].mxu0
        %v698 = vpop.f32.mrb[0].mxu0
        %699 = vdwg.mxu0
        %700 = vmatprep.subr.bf16.mxu0 0
        %701 = vmatpush1.bf16.msra.mxu0 %v550
        %702 = vmatprep.subr.bf16.mxu0 0
        %703 = vmatpush1.bf16.msra.mxu0 %v551
        %704 = vmatprep.subr.bf16.mxu0 0
        %705 = vmatpush1.bf16.msra.mxu0 %v552
        %706 = vmatprep.subr.bf16.mxu0 0
        %707 = vmatpush1.bf16.msra.mxu0 %v553
        %708 = vmatprep.subr.bf16.mxu0 0
        %709 = vmatpush1.bf16.msra.mxu0 %v554
        %710 = vmatprep.subr.bf16.mxu0 0
        %711 = vmatpush1.bf16.msra.mxu0 %v555
        %712 = vmatprep.subr.bf16.mxu0 0
        %713 = vmatpush1.bf16.msra.mxu0 %v556
        %714 = vmatprep.subr.bf16.mxu0 0
        %715 = vmatpush1.bf16.msra.mxu0 %v557
        %716 = vmatprep.subr.bf16.mxu0 0
        %717 = vmatpush1.bf16.msra.mxu0 %v558
        %718 = vmatprep.subr.bf16.mxu0 0
        %719 = vmatpush1.bf16.msra.mxu0 %v559
        %720 = vmatprep.subr.bf16.mxu0 0
        %721 = vmatpush1.bf16.msra.mxu0 %v560
        %722 = vmatprep.subr.bf16.mxu0 0
        %723 = vmatpush1.bf16.msra.mxu0 %v561
        %724 = vmatprep.subr.bf16.mxu0 0
        %725 = vmatpush1.bf16.msra.mxu0 %v562
        %726 = vmatprep.subr.bf16.mxu0 0
        %727 = vmatpush1.bf16.msra.mxu0 %v563
        %728 = vmatprep.subr.bf16.mxu0 0
        %729 = vmatpush1.bf16.msra.mxu0 %v564
        %730 = vmatprep.subr.bf16.mxu0 0
        %731 = vmatpush1.bf16.msra.mxu0 %v565
        %732 = vmatprep.mubr.bf16.mxu0 %v215
        %733 = vmatmul.mubr.bf16.gmra.mrb[0].mxu0 %v214
        %v734 = vpop.f32.mrb[0].mxu0
        %v735 = vadd.f32 %v695, %v734
        %v736 = vpop.f32.mrb[0].mxu0
        %v737 = vpop.f32.mrb[0].mxu0
        %v738 = vpop.f32.mrb[0].mxu0
        %739 = vdwg.mxu0
        %740 = vmatprep.subr.bf16.mxu0 0
        %741 = vmatpush1.bf16.msra.mxu0 %v566
        %742 = vmatprep.subr.bf16.mxu0 0
        %743 = vmatpush1.bf16.msra.mxu0 0
        %744 = vmatprep.subr.bf16.mxu0 0
        %745 = vmatpush1.bf16.msra.mxu0 0
        %746 = vmatprep.subr.bf16.mxu0 0
        %747 = vmatpush1.bf16.msra.mxu0 0
        %748 = vmatprep.subr.bf16.mxu0 0
        %749 = vmatpush1.bf16.msra.mxu0 0
        %750 = vmatprep.subr.bf16.mxu0 0
        %751 = vmatpush1.bf16.msra.mxu0 0
        %752 = vmatprep.subr.bf16.mxu0 0
        %753 = vmatpush1.bf16.msra.mxu0 0
        %754 = vmatprep.subr.bf16.mxu0 0
        %755 = vmatpush1.bf16.msra.mxu0 0
        %756 = vmatprep.subr.bf16.mxu0 0
        %757 = vmatpush1.bf16.msra.mxu0 0
        %758 = vmatprep.subr.bf16.mxu0 0
        %759 = vmatpush1.bf16.msra.mxu0 0
        %760 = vmatprep.subr.bf16.mxu0 0
        %761 = vmatpush1.bf16.msra.mxu0 0
        %762 = vmatprep.subr.bf16.mxu0 0
        %763 = vmatpush1.bf16.msra.mxu0 0
        %764 = vmatprep.subr.bf16.mxu0 0
        %765 = vmatpush1.bf16.msra.mxu0 0
        %766 = vmatprep.subr.bf16.mxu0 0
        %767 = vmatpush1.bf16.msra.mxu0 0
        %768 = vmatprep.subr.bf16.mxu0 0
        %769 = vmatpush1.bf16.msra.mxu0 0
        %770 = vmatprep.subr.bf16.mxu0 0
        %771 = vmatpush1.bf16.msra.mxu0 0
        %772 = vmatprep.mubr.bf16.mxu0 0
        %773 = vmatmul.mubr.bf16.gmra.mrb[0].mxu0 %v618
        %v774 = vpop.f32.mrb[0].mxu0
        %v775 = vadd.f32 %v735, %v774
        %v776 = vpop.f32.mrb[0].mxu0
        %v777 = vpop.f32.mrb[0].mxu0
        %v778 = vpop.f32.mrb[0].mxu0
        %779 = vdwg.mxu0
        %v780 = vmax.f32 %v775, 0.0
        %v781 = vlaneseq
        %v782 = vand.u32 %v781, 127
        %vm783 = vcmp.lt.s32.totalorder %v782, 20
        %v784 = vsel %vm783, %v780, -inf
        %785 = vmax.xlane.f32.xlu0 %v784
        %v786 = vpop.xlane.xlu0 %785
        %v787 = vsub.f32 %v784, %v786
        %v788 = vmul.f32 %v787, 1.442695
        %v789 = vpow.pop %v788
        %790 = vadd.xlane.f32.xlu0 %v789
        %v791 = vpop.xlane.xlu0 %790
        %v792 = vlog2.pop %v791
        %v793 = vmul.f32 %v792, 0.6931472
        %v794 = vadd.f32 %v786, %v793
        %v795 = vsub.f32 %v784, %v794
        %vm796 = vcmask 162816
        %797 = vst.msk [vmem:[%s201] sm:$0xff] %vm796, %v795
        %s798 = sand.u32 %s97, 1
        %s799 = scalar_lea.sflag [#allocation4], %s798
        %s800 = sand.u32 %s97, 1
        %s801 = smul.addr %s800, 8
        %s802 = scalar_lea.vmem [#allocation7], %s801
        // Predicated region
        $region41: #{tpu_custom_call.1} parent=31 // pred_check
          %p803 = pneg %p107
        $region42: #{tpu_custom_call.1} parent=31 // pred_check_branch
          %805 = sbr.rel (%p803) target = $region44
        $region43: #{tpu_custom_call.1} parent=31 // pred_region
          %s807 = ssub.s32 128, 128
          %808 = vsyncadd %s799, %s807
          %s809 = smul.addr %s21, 128
          %s810 = scalar_lea.hbm %s3, %s809
          %s812 = sshll.u32 %s802, 4
          %s813 = int_to_ptr.vmem [resolvable:$true] %s812
          %815 = dma.vmem_to_hbm [thread:$0]  %s813, 128, %s810, %s799
        $region44: #{tpu_custom_call.1} parent=31 // pred_fallthru
          _
      $region32: #{tpu_custom_call.1} parent=5 // pred_fallthru
        _
      %p816 = scmp.le.s32.totalorder 2, %s16
      // Predicated region
      $region45: #{tpu_custom_call.1} parent=5 // pred_check
        %p817 = pneg %p816
      $region46: #{tpu_custom_call.1} parent=5 // pred_check_branch
        %819 = sbr.rel (%p817) target = $region48
      $region47: #{tpu_custom_call.1} parent=5 // pred_region
        %s820 = ssub.s32 %s16, 2
        // Predicated region
        $region49: #{tpu_custom_call.1} parent=47 // pred_check
          %p821 = pneg %p113
        $region50: #{tpu_custom_call.1} parent=47 // pred_check_branch
          %823 = sbr.rel (%p821) target = $region52
        $region51: #{tpu_custom_call.1} parent=47 // pred_region
          %s824 = sand.u32 %s98, 1
          %s825 = scalar_lea.sflag [#allocation4], %s824
          %s826 = sand.u32 %s98, 1
          %s827 = smul.addr %s826, 8
          %s828 = scalar_lea.vmem [#allocation7], %s827
          %829 = dma.done %s825, 128
        $region52: #{tpu_custom_call.1} parent=47 // pred_fallthru
          _
      $region48: #{tpu_custom_call.1} parent=5 // pred_fallthru
        _
    $region6: #{tpu_custom_call.1} parent=1 // loop_footer
      %s20 = sadd.s32 1, %s16
    $region7: #{tpu_custom_call.1} parent=1 // loop_footer_branch
      %15 = sbr.rel target = $region3
    $region8: #{tpu_custom_call.1} parent=1 // loop_exit
      _
    %830 = vsyncpa [#allocation3], 1
    %s831 = scalar_lea.sflag [#allocation3], 1
    %832 = vsyncpa %s831, 1
    %833 = vsyncpa [#allocation6], 1
    %834 = vsyncpa [#allocation4], 1
    %s835 = scalar_lea.sflag [#allocation4], 1
    %836 = vsyncpa %s835, 1

</llo_original>
